<compile_context>
chip_gen: v7x
topology: tpu7x:2x2x1
jax: 0.10.0
libtpu: 0.0.40
codegen_flags: <defaults>
</compile_context>

<pallas_src>
import jax
import jax.numpy as jnp
from jax.experimental import pallas as pl
from jax.experimental.pallas import tpu as pltpu

ENCODER_REGULAR_VTH = 0.999  # unused for Poisson spikes; kept for parity with the module
_TWO_24 = 1 << 24


def _round_up(x, m):
    return ((x + m - 1) // m) * m


def _pick_batch_tiling(batch):
    """Return (B_pad, tile_b) such that tile_b divides B_pad and blocks are layout-legal."""
    if batch <= 512:
        return batch, batch          # single full-extent batch tile
    b_pad = _round_up(batch, 8)
    for tb in (512, 256, 128, 64, 32, 16, 8):
        if b_pad % tb == 0:
            return b_pad, tb
    return b_pad, 8                  # unreachable (b_pad is a multiple of 8)


# --------------------- TPU fast path: hardware PRNG --------------------------
def _poisson_kernel_tpu(seed_ref, obs_ref, mean_ref, std_ref, out_ref, thr_ref):
    b = pl.program_id(0)
    t = pl.program_id(1)

    # Gaussian population coding -> integer Bernoulli threshold, once per batch tile.
    @pl.when(t == 0)
    def _():
        diff = obs_ref[...] - mean_ref[...]
        pop_act = jnp.exp(-0.5 * diff * diff / (std_ref[...] * std_ref[...]))
        thr_ref[...] = (pop_act * jnp.float32(_TWO_24)).astype(jnp.uint32)

    # Independent random stream per (batch tile, timestep) so tiles / cores decorrelate.
    pltpu.prng_seed(seed_ref[0] + b * pl.num_programs(1) + t)
    bits = pltpu.bitcast(pltpu.prng_random_bits(thr_ref.shape), jnp.uint32)
    # spike = 1 with probability thr / 2^24  (== pop_act up to 2^-24 quantization)
    out_ref[0] = ((bits >> 8) < thr_ref[...]).astype(out_ref.dtype)


# ------------- portable fallback (CPU / interpret): bits fed from outside ----
def _poisson_kernel_bits(bits_ref, obs_ref, mean_ref, std_ref, out_ref):
    diff = obs_ref[...] - mean_ref[...]
    pop_act = jnp.exp(-0.5 * diff * diff / (std_ref[...] * std_ref[...]))
    thr = (pop_act * jnp.float32(_TWO_24)).astype(jnp.uint32)
    out_ref[0] = ((bits_ref[0] >> 8) < thr).astype(out_ref.dtype)


def pop_spike_encoder_poisson(obs, mean, std, spike_ts, seed, *, time_major=False):
    """obs: (B, obs_dim) f32; mean/std: (1, obs_dim, pop_dim) f32.
    Returns (B, obs_dim*pop_dim, spike_ts) f32 (PyTorch layout) by default, or the
    lane-dense time-major (spike_ts, B, N) layout if time_major=True (no final transpose)."""
    B, obs_dim = obs.shape
    pop_dim = mean.shape[-1]
    N = obs_dim * pop_dim
    N_pad = _round_up(N, 128)
    B_pad, tb = _pick_batch_tiling(B)
    nb = B_pad // tb
    T = int(spike_ts)

    # Replicate obs over the population axis; neuron index = d * pop_dim + p.
    obs_rep = jnp.repeat(obs.astype(jnp.float32), pop_dim, axis=1)      # (B, N)
    mean_flat = mean.reshape(1, N).astype(jnp.float32)
    std_flat = std.reshape(1, N).astype(jnp.float32)
    if B_pad != B:
        obs_rep = jnp.pad(obs_rep, ((0, B_pad - B), (0, 0)))
    if N_pad != N:
        obs_rep = jnp.pad(obs_rep, ((0, 0), (0, N_pad - N)))
        # padded lanes: mean far away, std = 1 -> pop_act ~ 0 (and sliced off anyway)
        mean_flat = jnp.pad(mean_flat, ((0, 0), (0, N_pad - N)), constant_values=1e9)
        std_flat = jnp.pad(std_flat, ((0, 0), (0, N_pad - N)), constant_values=1.0)

    out_shape = jax.ShapeDtypeStruct((T, B_pad, N_pad), jnp.float32)
    out_spec = pl.BlockSpec((1, tb, N_pad), lambda b, t, *_: (t, b, 0))
    obs_spec = pl.BlockSpec((tb, N_pad), lambda b, t, *_: (b, 0))
    par_spec = pl.BlockSpec((1, N_pad), lambda b, t, *_: (0, 0))

    if jax.default_backend() == "tpu":
        seed_arr = jnp.asarray([seed], dtype=jnp.int32)
        grid_spec = pltpu.PrefetchScalarGridSpec(
            num_scalar_prefetch=1,                 # seed lands in SMEM
            grid=(nb, T),                          # t innermost -> threshold scratch reuse
            in_specs=[obs_spec, par_spec, par_spec],
            out_specs=out_spec,
            scratch_shapes=[pltpu.VMEM((tb, N_pad), jnp.uint32)],
        )
        cost = pl.CostEstimate(
            flops=int(5 * B_pad * N_pad + 3 * T * B_pad * N_pad),
            transcendentals=int(B_pad * N_pad),
            bytes_accessed=int(4 * (T * B_pad * N_pad + 3 * B_pad * N_pad)),
        )
        out_tbn = pl.pallas_call(
            _poisson_kernel_tpu,
            out_shape=out_shape,
            grid_spec=grid_spec,
            compiler_params=pltpu.CompilerParams(
                dimension_semantics=("parallel", "arbitrary"),  # batch tiles across cores
                has_side_effects=True,                          # stateful PRNG
            ),
            cost_estimate=cost,
        )(seed_arr, obs_rep, mean_flat, std_flat)
    else:
        # No TPU hardware PRNG available (interpret / CPU): feed uint32 bits from jax.random.
        key = jax.random.fold_in(jax.random.PRNGKey(0), seed)
        bits = jax.random.bits(key, (T, B_pad, N_pad), dtype=jnp.uint32)
        bits_spec = pl.BlockSpec((1, tb, N_pad), lambda b, t, *_: (t, b, 0))
        out_tbn = pl.pallas_call(
            _poisson_kernel_bits,
            out_shape=out_shape,
            grid=(nb, T),
            in_specs=[bits_spec, obs_spec, par_spec, par_spec],
            out_specs=out_spec,
        )(bits, obs_rep, mean_flat, std_flat)

    out_tbn = out_tbn[:, :B, :N]
    if time_major:
        return out_tbn                             # (T, B, N): lane-dense, no transpose
    # PyTorch module layout (batch, encoder_neuron_num, spike_ts)
    return jnp.transpose(out_tbn, (1, 2, 0))


def make_encoder_params(obs_dim, pop_dim, mean_range, std):
    """Deterministic parameter init, mirroring the module __init__."""
    delta_mean = (mean_range[1] - mean_range[0]) / (pop_dim - 1)
    means = mean_range[0] + delta_mean * jnp.arange(pop_dim, dtype=jnp.float32)   # (pop_dim,)
    mean = jnp.broadcast_to(means[None, None, :], (1, obs_dim, pop_dim))
    std_arr = jnp.full((1, obs_dim, pop_dim), std, dtype=jnp.float32)
    return mean, std_arr


if __name__ == "__main__":
    obs_dim, pop_dim, spike_ts = 4, 8, 8
    batch_size = 2
    mean_range = (-3.0, 3.0)
    std = 0.5

    mean, std_arr = make_encoder_params(obs_dim, pop_dim, mean_range, std)

    key = jax.random.PRNGKey(0)
    obs = jax.random.normal(key, (batch_size, obs_dim), dtype=jnp.float32)

    pop_spikes = pop_spike_encoder_poisson(obs, mean, std_arr, spike_ts, seed=0)
    pop_spikes = jax.block_until_ready(pop_spikes)

    assert pop_spikes.shape == (batch_size, obs_dim * pop_dim, spike_ts)
    assert pop_spikes.dtype == jnp.float32
    # spikes are binary
    assert bool(jnp.all((pop_spikes == 0.0) | (pop_spikes == 1.0)))

    # sanity: empirical per-neuron spike rate should track pop_act (Bernoulli mean)
    pop_act_ref = jnp.exp(
        -0.5 * (obs[:, :, None] - mean) ** 2 / (std_arr ** 2)
    ).reshape(batch_size, obs_dim * pop_dim)
    emp_rate = pop_spikes.mean(axis=-1)
    assert float(jnp.mean(jnp.abs(emp_rate - pop_act_ref))) < 0.3  # T=8 samples, loose

    print("KERNEL_OK")
</pallas_src>

<mosaic_0001>
module attributes {stable_mosaic.version = 11 : i64} {
  func.func @_poisson_kernel_bits(%arg0: i32, %arg1: i32, %arg2: memref<1x2x128xi32, #tpu.memory_space<vmem>>, %arg3: memref<2x128xf32, #tpu.memory_space<vmem>>, %arg4: memref<1x128xf32, #tpu.memory_space<vmem>>, %arg5: memref<1x128xf32, #tpu.memory_space<vmem>>, %arg6: memref<1x2x128xf32, #tpu.memory_space<vmem>>) attributes {dimension_semantics = [#tpu.dimension_semantics<arbitrary>, #tpu.dimension_semantics<arbitrary>], iteration_bounds = array<i64: 1, 8>, scalar_prefetch = 0 : i64, scratch_operands = 0 : i64, tpu.core_type = #tpu.core_type<tc>, window_params = [{transform_indices = @transform_0, window_bounds = array<i64: 1, 2, 128>}, {transform_indices = @transform_1, window_bounds = array<i64: 2, 128>}, {pipeline_mode = #tpu.pipeline_mode<synchronous>, transform_indices = @transform_2, window_bounds = array<i64: 1, 128>}, {pipeline_mode = #tpu.pipeline_mode<synchronous>, transform_indices = @transform_3, window_bounds = array<i64: 1, 128>}, {transform_indices = @transform_4, window_bounds = array<i64: 1, 2, 128>}]} {
    %c0 = arith.constant 0 : index
    %c0_0 = arith.constant 0 : index
    %0 = vector.load %arg3[%c0, %c0_0] : memref<2x128xf32, #tpu.memory_space<vmem>>, vector<2x128xf32>
    %c0_1 = arith.constant 0 : index
    %c0_2 = arith.constant 0 : index
    %1 = vector.load %arg4[%c0_1, %c0_2] : memref<1x128xf32, #tpu.memory_space<vmem>>, vector<1x128xf32>
    %2 = vector.broadcast %1 : vector<1x128xf32> to vector<2x128xf32>
    %3 = arith.subf %0, %2 : vector<2x128xf32>
    %cst = arith.constant -5.000000e-01 : f32
    %4 = vector.broadcast %cst : f32 to vector<2x128xf32>
    %5 = arith.mulf %4, %3 : vector<2x128xf32>
    %6 = arith.mulf %5, %3 : vector<2x128xf32>
    %c0_3 = arith.constant 0 : index
    %c0_4 = arith.constant 0 : index
    %7 = vector.load %arg5[%c0_3, %c0_4] : memref<1x128xf32, #tpu.memory_space<vmem>>, vector<1x128xf32>
    %c0_5 = arith.constant 0 : index
    %c0_6 = arith.constant 0 : index
    %8 = vector.load %arg5[%c0_5, %c0_6] : memref<1x128xf32, #tpu.memory_space<vmem>>, vector<1x128xf32>
    %9 = arith.mulf %7, %8 : vector<1x128xf32>
    %10 = vector.broadcast %9 : vector<1x128xf32> to vector<2x128xf32>
    %11 = arith.divf %6, %10 : vector<2x128xf32>
    %12 = math.exp %11 : vector<2x128xf32>
    %cst_7 = arith.constant 0x4B800000 : f32
    %13 = vector.broadcast %cst_7 : f32 to vector<2x128xf32>
    %14 = arith.mulf %12, %13 : vector<2x128xf32>
    %15 = arith.fptoui %14 : vector<2x128xf32> to vector<2x128xi32>
    %c0_8 = arith.constant 0 : index
    %c0_9 = arith.constant 0 : index
    %c0_10 = arith.constant 0 : index
    %16 = vector.load %arg2[%c0_8, %c0_9, %c0_10] : memref<1x2x128xi32, #tpu.memory_space<vmem>>, vector<1x2x128xi32>
    %17 = vector.shape_cast %16 : vector<1x2x128xi32> to vector<2x128xi32>
    %c8_i32 = arith.constant 8 : i32
    %18 = vector.broadcast %c8_i32 : i32 to vector<2x128xi32>
    %19 = arith.shrui %17, %18 : vector<2x128xi32>
    %20 = arith.cmpi ult, %19, %15 : vector<2x128xi32>
    %21 = arith.extui %20 : vector<2x128xi1> to vector<2x128xi32>
    %22 = arith.sitofp %21 : vector<2x128xi32> to vector<2x128xf32>
    %c0_11 = arith.constant 0 : index
    %c0_12 = arith.constant 0 : index
    %c0_13 = arith.constant 0 : index
    %23 = vector.load %arg6[%c0_11, %c0_12, %c0_13] : memref<1x2x128xf32, #tpu.memory_space<vmem>>, vector<1x2x128xf32>
    %24 = vector.shape_cast %23 : vector<1x2x128xf32> to vector<2x128xf32>
    %25 = vector.shape_cast %22 : vector<2x128xf32> to vector<1x2x128xf32>
    tpu.vector_store %arg6[%c0_11, %c0_12, %c0_13], %25 {strides = array<i32>} : memref<1x2x128xf32, #tpu.memory_space<vmem>>, vector<1x2x128xf32>,
    return
  }
  func.func @transform_0(%arg0: i32, %arg1: i32) -> (i32, i32, i32) {
    %c0_i32 = arith.constant 0 : i32
    %c0_i32_0 = arith.constant 0 : i32
    return %arg1, %arg0, %c0_i32 : i32, i32, i32
  }
  func.func @transform_1(%arg0: i32, %arg1: i32) -> (i32, i32) {
    %c0_i32 = arith.constant 0 : i32
    %c0_i32_0 = arith.constant 0 : i32
    return %arg0, %c0_i32 : i32, i32
  }
  func.func @transform_2(%arg0: i32, %arg1: i32) -> (i32, i32) {
    %c0_i32 = arith.constant 0 : i32
    %c0_i32_0 = arith.constant 0 : i32
    %c0_i32_1 = arith.constant 0 : i32
    return %c0_i32, %c0_i32_0 : i32, i32
  }
  func.func @transform_3(%arg0: i32, %arg1: i32) -> (i32, i32) {
    %c0_i32 = arith.constant 0 : i32
    %c0_i32_0 = arith.constant 0 : i32
    %c0_i32_1 = arith.constant 0 : i32
    return %c0_i32, %c0_i32_0 : i32, i32
  }
  func.func @transform_4(%arg0: i32, %arg1: i32) -> (i32, i32, i32) {
    %c0_i32 = arith.constant 0 : i32
    %c0_i32_0 = arith.constant 0 : i32
    return %arg1, %arg0, %c0_i32 : i32, i32, i32
  }
}

</mosaic_0001>

<llo_original>
// kernel: tpu_custom_call.1
$region0: #{tpu_custom_call.1}
  #allocation0 [shape = 'u32[]', space=smem, size = 0x4, offset = 0x4, fixed_abs, tag = 'smem constant byte address 0x4 - core index']
  #allocation1 [shape = 'u32[144,128]{1,0:T(1,128)}', space=vmem, size = 0x12000, scoped, tag = 'internal scratch']
  %s0 = inlined_call_operand.hbm [shape: u32[8,2,128], index: 0, kind: input, shape index: {}]
  %s1 = inlined_call_operand.vmem [shape: f32[2,128], index: 1, kind: input, shape index: {}]
  %s2 = inlined_call_operand.vmem [shape: f32[1,128], index: 2, kind: input, shape index: {}]
  %s3 = inlined_call_operand.vmem [shape: f32[1,128], index: 3, kind: input, shape index: {}]
  %s4 = inlined_call_operand.hbm [shape: f32[8,2,128], index: 4, kind: output, shape index: {}]
  %s5 = sld [smem:[#allocation0]]
  $region53: #{tpu_custom_call.1} parent=0
    _
  %s7 = ssub.s32 1, %s5
  %s8 = scalar_select 0, %s7, %s5
  $region1: #{tpu_custom_call.1} parent=0
    #allocation2 [shape = 'u8[2048]{0}', space=vmem, size = 0x800, scoped, tag = 'input window, operand 0']
    #allocation3 [shape = 's32[2]{0}', space=sflag, size = 0x8, scoped, tag = 'scoped memory for tpu_custom_call.1']
    #allocation4 [shape = 's32[2]{0}', space=sflag, size = 0x8, scoped, tag = 'scoped memory for tpu_custom_call.1']
    #allocation5 [shape = 'u8[2048]{0}', space=vmem, size = 0x800, scoped, tag = 'output window, operand 0']
    %9 = vsyncpa [#allocation3], 0
    %s10 = scalar_lea.sflag [#allocation3], 1
    %11 = vsyncpa %s10, 0
    %12 = vsyncpa [#allocation4], 0
    %s13 = scalar_lea.sflag [#allocation4], 1
    %14 = vsyncpa %s13, 0
    loop: start=0, step=1, limit=10
    $region2: #{tpu_custom_call.1} parent=1 // loop_pre_header
      _
    $region3: #{tpu_custom_call.1} parent=1 // loop_header
      %s16 = sphi 0, %s20
      %p17 = scmp.ge.s32.totalorder %s16, 10
      %s23 = sphi 0, %s35
      %s24 = sphi 0, %s31
      %s25 = sphi 0, %s23
      %s26 = sphi 0, %s24
      %s27 = sphi 0, %s25
      %s28 = sphi 0, %s26
      %s40 = sphi 0, %s42
      %s43 = sphi 0, %s40
      %s44 = sphi 0, %s43
      %s60 = sphi 0, %s44
      %s66 = sphi 0, %s68
      %s69 = sphi 0, %s66
      %s70 = sphi 0, %s69
      %s86 = sphi 0, %s70
      %s90 = sphi 0, %s90
      %s92 = sphi 0, %s90
      %s93 = sphi 0, %s92
      %s107 = sphi 0, %s93
      %s111 = sphi 0, %s111
      %s113 = sphi 0, %s111
      %s114 = sphi 0, %s113
      %s128 = sphi 0, %s114
      %s136 = sphi 0, %s138
      %s139 = sphi 0, %s136
      %s140 = sphi 0, %s139
      %s156 = sphi 0, %s140
    $region4: #{tpu_custom_call.1} parent=1 // loop_header_branch
      %19 = sbr.rel (%p17) target = $region8
    $region5: #{tpu_custom_call.1} parent=1 // loop_body
      %s21 = ssub.s32 %s16, 1
      %s22 = ssub.s32 %s16, 2
      %s29 = sadd.s32 1, %s24
      %p30 = scmp.ge.s32.totalorder %s29, 8
      %s31 = scalar_select %p30, 0, %s29
      %s32 = sadd.s32 1, %s23
      %s33 = scalar_select %p30, %s32, %s23
      %p34 = scmp.ge.s32.totalorder %s33, 1
      %s35 = scalar_select %p34, 0, %s33
      %s36 = ssub.s32 %s24, %s31
      %s37 = ssub.s32 %s23, %s35
      %s38 = sor.u32 %s36, %s37
      %p39 = scmp.eq.s32.totalorder %s38, 0
      %s41 = sadd.s32 %s40, 1
      %s42 = scalar_select %p39, %s40, %s41
      %p45 = pneg %p39
      %p46 = scmp.eq.s32.totalorder %s16, 7
      %p47 = por %p45, %p46
      %p48 = scmp.ne.s32.totalorder %s40, %s43
      %p49 = scmp.eq.s32.totalorder %s16, 0
      %p50 = por %p48, %p49
      %p51 = scmp.ne.s32.totalorder %s40, %s43
      %p52 = scmp.eq.s32.totalorder %s21, 7
      %p53 = por %p51, %p52
      %p54 = scmp.ne.s32.totalorder %s43, %s44
      %p55 = scmp.eq.s32.totalorder %s21, 0
      %p56 = por %p54, %p55
      %p57 = scmp.ne.s32.totalorder %s43, %s44
      %p58 = scmp.eq.s32.totalorder %s22, 7
      %p59 = por %p57, %p58
      %p61 = scmp.ne.s32.totalorder %s44, %s60
      %p62 = scmp.eq.s32.totalorder %s22, 0
      %p63 = por %p61, %p62
      %s64 = ssub.s32 %s23, %s35
      %p65 = scmp.eq.s32.totalorder %s64, 0
      %s67 = sadd.s32 %s66, 1
      %s68 = scalar_select %p65, %s66, %s67
      %p71 = pneg %p65
      %p72 = scmp.eq.s32.totalorder %s16, 7
      %p73 = por %p71, %p72
      %p74 = scmp.ne.s32.totalorder %s66, %s69
      %p75 = scmp.eq.s32.totalorder %s16, 0
      %p76 = por %p74, %p75
      %p77 = scmp.ne.s32.totalorder %s66, %s69
      %p78 = scmp.eq.s32.totalorder %s21, 7
      %p79 = por %p77, %p78
      %p80 = scmp.ne.s32.totalorder %s69, %s70
      %p81 = scmp.eq.s32.totalorder %s21, 0
      %p82 = por %p80, %p81
      %p83 = scmp.ne.s32.totalorder %s69, %s70
      %p84 = scmp.eq.s32.totalorder %s22, 7
      %p85 = por %p83, %p84
      %p87 = scmp.ne.s32.totalorder %s70, %s86
      %p88 = scmp.eq.s32.totalorder %s22, 0
      %p89 = por %p87, %p88
      %s91 = sadd.s32 %s90, 1
      %p94 = scmp.eq.s32.totalorder %s16, 7
      %p95 = scmp.ne.s32.totalorder %s90, %s92
      %p96 = scmp.eq.s32.totalorder %s16, 0
      %p97 = por %p95, %p96
      %p98 = scmp.ne.s32.totalorder %s90, %s92
      %p99 = scmp.eq.s32.totalorder %s21, 7
      %p100 = por %p98, %p99
      %p101 = scmp.ne.s32.totalorder %s92, %s93
      %p102 = scmp.eq.s32.totalorder %s21, 0
      %p103 = por %p101, %p102
      %p104 = scmp.ne.s32.totalorder %s92, %s93
      %p105 = scmp.eq.s32.totalorder %s22, 7
      %p106 = por %p104, %p105
      %p108 = scmp.ne.s32.totalorder %s93, %s107
      %p109 = scmp.eq.s32.totalorder %s22, 0
      %p110 = por %p108, %p109
      %s112 = sadd.s32 %s111, 1
      %p115 = scmp.eq.s32.totalorder %s16, 7
      %p116 = scmp.ne.s32.totalorder %s111, %s113
      %p117 = scmp.eq.s32.totalorder %s16, 0
      %p118 = por %p116, %p117
      %p119 = scmp.ne.s32.totalorder %s111, %s113
      %p120 = scmp.eq.s32.totalorder %s21, 7
      %p121 = por %p119, %p120
      %p122 = scmp.ne.s32.totalorder %s113, %s114
      %p123 = scmp.eq.s32.totalorder %s21, 0
      %p124 = por %p122, %p123
      %p125 = scmp.ne.s32.totalorder %s113, %s114
      %p126 = scmp.eq.s32.totalorder %s22, 7
      %p127 = por %p125, %p126
      %p129 = scmp.ne.s32.totalorder %s114, %s128
      %p130 = scmp.eq.s32.totalorder %s22, 0
      %p131 = por %p129, %p130
      %s132 = ssub.s32 %s24, %s31
      %s133 = ssub.s32 %s23, %s35
      %s134 = sor.u32 %s132, %s133
      %p135 = scmp.eq.s32.totalorder %s134, 0
      %s137 = sadd.s32 %s136, 1
      %s138 = scalar_select %p135, %s136, %s137
      %p141 = pneg %p135
      %p142 = scmp.eq.s32.totalorder %s16, 7
      %p143 = por %p141, %p142
      %p144 = scmp.ne.s32.totalorder %s136, %s139
      %p145 = scmp.eq.s32.totalorder %s16, 0
      %p146 = por %p144, %p145
      %p147 = scmp.ne.s32.totalorder %s136, %s139
      %p148 = scmp.eq.s32.totalorder %s21, 7
      %p149 = por %p147, %p148
      %p150 = scmp.ne.s32.totalorder %s139, %s140
      %p151 = scmp.eq.s32.totalorder %s21, 0
      %p152 = por %p150, %p151
      %p153 = scmp.ne.s32.totalorder %s139, %s140
      %p154 = scmp.eq.s32.totalorder %s22, 7
      %p155 = por %p153, %p154
      %p157 = scmp.ne.s32.totalorder %s140, %s156
      %p158 = scmp.eq.s32.totalorder %s22, 0
      %p159 = por %p157, %p158
      %p160 = scmp.le.s32.totalorder 1, %s16
      %p161 = scmp.lt.s32.totalorder %s16, 9
      %p162 = pnand %p160, %p161
      %p163 = pneg %p162
      // Predicated region
      $region9: #{tpu_custom_call.1} parent=5 // pred_check
        _
      $region10: #{tpu_custom_call.1} parent=5 // pred_check_branch
        %165 = sbr.rel (%p162) target = $region12
      $region11: #{tpu_custom_call.1} parent=5 // pred_region
        %s166 = ssub.s32 %s16, 1
        // Predicated region
        $region13: #{tpu_custom_call.1} parent=11 // pred_check
          %p167 = pneg %p82
        $region14: #{tpu_custom_call.1} parent=11 // pred_check_branch
          %169 = sbr.rel (%p167) target = $region16
        $region15: #{tpu_custom_call.1} parent=11 // pred_region
          %p170 = scmp.lt.s32.totalorder %s25, 0
          %s171 = scalar_select %p170, %s25, 0
          %s172 = smul.addr %s171, 2
          %s173 = scalar_lea.vmem %s1, %s172
        $region16: #{tpu_custom_call.1} parent=11 // pred_fallthru
          _
        // Predicated region
        $region17: #{tpu_custom_call.1} parent=11 // pred_check
          %p174 = pneg %p103
        $region18: #{tpu_custom_call.1} parent=11 // pred_check_branch
          %176 = sbr.rel (%p174) target = $region20
        $region19: #{tpu_custom_call.1} parent=11 // pred_region
          _
        $region20: #{tpu_custom_call.1} parent=11 // pred_fallthru
          _
        // Predicated region
        $region21: #{tpu_custom_call.1} parent=11 // pred_check
          %p177 = pneg %p124
        $region22: #{tpu_custom_call.1} parent=11 // pred_check_branch
          %179 = sbr.rel (%p177) target = $region24
        $region23: #{tpu_custom_call.1} parent=11 // pred_region
          _
        $region24: #{tpu_custom_call.1} parent=11 // pred_fallthru
          _
      $region12: #{tpu_custom_call.1} parent=5 // pred_fallthru
        _
      %p180 = scmp.lt.s32.totalorder %s16, 8
      // Predicated region
      $region25: #{tpu_custom_call.1} parent=5 // pred_check
        %p181 = pneg %p180
      $region26: #{tpu_custom_call.1} parent=5 // pred_check_branch
        %183 = sbr.rel (%p181) target = $region28
      $region27: #{tpu_custom_call.1} parent=5 // pred_region
        // Predicated region
        $region29: #{tpu_custom_call.1} parent=27 // pred_check
          %p184 = pneg %p50
        $region30: #{tpu_custom_call.1} parent=27 // pred_check_branch
          %186 = sbr.rel (%p184) target = $region32
        $region31: #{tpu_custom_call.1} parent=27 // pred_region
          %s187 = sand.u32 %s40, 1
          %s188 = scalar_lea.sflag [#allocation3], %s187
          %s189 = sand.u32 %s40, 1
          %s190 = smul.addr %s189, 2
          %s191 = scalar_lea.vmem [#allocation2], %s190
          %s193 = ssub.s32 32, 32
          %194 = vsyncadd %s188, %s193
          %s195 = sadd.s32 %s23, %s24
          %s196 = smul.addr %s195, 32
          %s197 = scalar_lea.hbm %s0, %s196
          %s199 = sshll.u32 %s191, 4
          %s200 = int_to_ptr.vmem [resolvable:$true] %s199
          %202 = dma.hbm_to_vmem [thread:$0]  %s197, 32, %s200, %s188
        $region32: #{tpu_custom_call.1} parent=27 // pred_fallthru
          _
      $region28: #{tpu_custom_call.1} parent=5 // pred_fallthru
        _
      %p203 = scmp.le.s32.totalorder 1, %s16
      %p204 = scmp.lt.s32.totalorder %s16, 9
      %p205 = pnand %p203, %p204
      %p206 = pneg %p205
      // Predicated region
      $region33: #{tpu_custom_call.1} parent=5 // pred_check
        _
      $region34: #{tpu_custom_call.1} parent=5 // pred_check_branch
        %208 = sbr.rel (%p205) target = $region36
      $region35: #{tpu_custom_call.1} parent=5 // pred_region
        %s209 = ssub.s32 %s16, 1
        %s210 = sand.u32 %s43, 1
        %s211 = scalar_lea.sflag [#allocation3], %s210
        %s212 = sand.u32 %s43, 1
        %s213 = smul.addr %s212, 2
        %s214 = scalar_lea.vmem [#allocation2], %s213
        // Predicated region
        $region37: #{tpu_custom_call.1} parent=35 // pred_check
          %p215 = pneg %p56
        $region38: #{tpu_custom_call.1} parent=35 // pred_check_branch
          %217 = sbr.rel (%p215) target = $region40
        $region39: #{tpu_custom_call.1} parent=35 // pred_region
          %218 = dma.done %s211, 32
        $region40: #{tpu_custom_call.1} parent=35 // pred_fallthru
          _
        %s219 = sand.u32 %s43, 1
        %s220 = scalar_lea.sflag [#allocation3], %s219
        %s221 = sand.u32 %s43, 1
        %s222 = smul.addr %s221, 2
        %s223 = scalar_lea.vmem [#allocation2], %s222
        %p224 = pneg %p56
        %p225 = pneg %p53
        %p226 = scmp.lt.s32.totalorder %s25, 0
        %s227 = scalar_select %p226, %s25, 0
        %s228 = smul.addr %s227, 2
        %s229 = scalar_lea.vmem %s1, %s228
        %p230 = pneg %p82
        %p231 = pneg %p79
        %p232 = pneg %p103
        %p233 = pneg %p100
        %p234 = pneg %p124
        %p235 = pneg %p121
        %p236 = pneg %p152
        %p237 = pneg %p149
        %s238 = sand.u32 %s139, 1
        %s239 = scalar_lea.sflag [#allocation4], %s238
        %s240 = sand.u32 %s139, 1
        %s241 = smul.addr %s240, 2
        %s242 = scalar_lea.vmem [#allocation5], %s241
        %p243 = scmp.lt.s32.totalorder %s25, 0
        %s244 = scalar_select %p243, %s25, 0
        %s245 = smul.addr %s244, 2
        %s246 = scalar_lea.vmem %s1, %s245
        %v247 = vld [vmem:[%s246] sm:$0x3]
        %v248 = vld [vmem:[%s2] sm:$0x1]
        %v250 = vlaneseq
        %v251 = vshrl.u32 %v250, 7
        %v252 = vsub.s32 0, %v251
        %v253 = vrot.slane %v248, %v252
        %v255 = vsub.f32 %v247, %v253
        %v256 = vmul.f32 %v255, -0.5
        %v257 = vmul.f32 %v256, %v255
        %v258 = vld [vmem:[%s3] sm:$0x1]
        %v259 = vmul.f32 %v258, %v258
        %v261 = vlaneseq
        %v262 = vshrl.u32 %v261, 7
        %v263 = vsub.s32 0, %v262
        %v264 = vrot.slane %v259, %v263
        %v266 = vrcp.pop %v264
        %v267 = vmul.f32 %v257, %v266
        %v268 = vmul.f32 %v267, 1.442695
        %v269 = vpow.pop %v268
        %v270 = vmul.f32 %v269, 16777216.0
        %v271 = vmax.f32 %v270, 0.0
        %v272 = vsub.f32 %v271, 2.1474836e+09
        %v273 = vtrunc.f32 %v272
        %v274 = vcvt.f32.s32 %v273
        %v275 = vadd.s32 2147483648, %v274
        %v276 = vtrunc.f32 %v271
        %v277 = vcvt.f32.s32 %v276
        %vm278 = vcmp.ge.f32.partialorder %v271, 2.1474836e+09
        %v279 = vsel %vm278, %v275, %v277
        %v280 = vld [vmem:[%s214] sm:$0x3]
        %v281 = vshrl.u32 %v280, 8
        %vm282 = vcmp.lt.u32.totalorder %v281, %v279
        %v283 = vsel %vm282, 1, 0
        %v284 = vcvt.s32.f32 %v283
        %285 = vst [vmem:[%s242] sm:$0x3] %v284
        %s286 = sand.u32 %s139, 1
        %s287 = scalar_lea.sflag [#allocation4], %s286
        %s288 = sand.u32 %s139, 1
        %s289 = smul.addr %s288, 2
        %s290 = scalar_lea.vmem [#allocation5], %s289
        // Predicated region
        $region41: #{tpu_custom_call.1} parent=35 // pred_check
          %p291 = pneg %p149
        $region42: #{tpu_custom_call.1} parent=35 // pred_check_branch
          %293 = sbr.rel (%p291) target = $region44
        $region43: #{tpu_custom_call.1} parent=35 // pred_region
          %s295 = ssub.s32 32, 32
          %296 = vsyncadd %s287, %s295
          %s297 = sadd.s32 %s25, %s26
          %s298 = smul.addr %s297, 32
          %s299 = scalar_lea.hbm %s4, %s298
          %s301 = sshll.u32 %s290, 4
          %s302 = int_to_ptr.vmem [resolvable:$true] %s301
          %304 = dma.vmem_to_hbm [thread:$0]  %s302, 32, %s299, %s287
        $region44: #{tpu_custom_call.1} parent=35 // pred_fallthru
          _
      $region36: #{tpu_custom_call.1} parent=5 // pred_fallthru
        _
      %p305 = scmp.le.s32.totalorder 2, %s16
      // Predicated region
      $region45: #{tpu_custom_call.1} parent=5 // pred_check
        %p306 = pneg %p305
      $region46: #{tpu_custom_call.1} parent=5 // pred_check_branch
        %308 = sbr.rel (%p306) target = $region48
      $region47: #{tpu_custom_call.1} parent=5 // pred_region
        %s309 = ssub.s32 %s16, 2
        // Predicated region
        $region49: #{tpu_custom_call.1} parent=47 // pred_check
          %p310 = pneg %p155
        $region50: #{tpu_custom_call.1} parent=47 // pred_check_branch
          %312 = sbr.rel (%p310) target = $region52
        $region51: #{tpu_custom_call.1} parent=47 // pred_region
          %s313 = sand.u32 %s140, 1
          %s314 = scalar_lea.sflag [#allocation4], %s313
          %s315 = sand.u32 %s140, 1
          %s316 = smul.addr %s315, 2
          %s317 = scalar_lea.vmem [#allocation5], %s316
          %318 = dma.done %s314, 32
        $region52: #{tpu_custom_call.1} parent=47 // pred_fallthru
          _
      $region48: #{tpu_custom_call.1} parent=5 // pred_fallthru
        _
    $region6: #{tpu_custom_call.1} parent=1 // loop_footer
      %s20 = sadd.s32 1, %s16
    $region7: #{tpu_custom_call.1} parent=1 // loop_footer_branch
      %15 = sbr.rel target = $region3
    $region8: #{tpu_custom_call.1} parent=1 // loop_exit
      _
    %319 = vsyncpa [#allocation3], 1
    %s320 = scalar_lea.sflag [#allocation3], 1
    %321 = vsyncpa %s320, 1
    %322 = vsyncpa [#allocation4], 1
    %s323 = scalar_lea.sflag [#allocation4], 1
    %324 = vsyncpa %s323, 1

</llo_original>
